<compile_context>
chip_gen: v5e
topology: v5e:2x2
jax: 0.10.0
libtpu: 0.0.40
codegen_flags: <defaults>
</compile_context>

<pallas_src>
import functools

import jax
import jax.numpy as jnp
from jax.experimental import pallas as pl
from jax.experimental.pallas import tpu as pltpu


def _round_up(x: int, m: int) -> int:
    return ((x + m - 1) // m) * m


def _anchor_ungsl_kernel(adj_ref, conf_ref, thr_ref, out_ref, *, beta: float):
    """One (tn, ta) tile of the elementwise forward pass (all math in f32)."""
    adj = adj_ref[...].astype(jnp.float32)      # (tn, ta)
    conf = conf_ref[...].astype(jnp.float32)    # (1, ta)  -> broadcast over rows
    thr = thr_ref[...].astype(jnp.float32)      # (tn, 1)  -> broadcast over cols

    # confidence_matrix * (learned_adj >= 0).int()
    conf_masked = jnp.where(adj >= 0.0, conf, 0.0)
    # sigmoid(conf - thresholds) / 0.5  (EUP handles the sigmoid, VPU the rest)
    weights = 2.0 * jax.nn.sigmoid(conf_masked - thr)
    # weights >= 1  <=>  sigmoid(x) >= 0.5  <=>  conf_masked >= thr.
    # Exact predicate on the VPU: issues in parallel with the sigmoid and is
    # independent of sigmoid numerics (safe under bf16 / approx-EUP variants).
    masks = jnp.where(conf_masked >= thr, weights, jnp.float32(beta))

    out_ref[...] = (adj * masks).astype(out_ref.dtype)


@functools.partial(jax.jit, static_argnames=("beta",))
def _anchor_ungsl_pallas(learned_adj, conf_row, thresholds, *, beta: float):
    n, a = learned_adj.shape
    dtype = learned_adj.dtype
    itemsize = jnp.dtype(dtype).itemsize

    # Sublane granularity: 8 rows for 32-bit, 16 for 16-bit dtypes.
    sub = 8 if itemsize >= 4 else 16
    # Per streamed buffer budget. 4 MiB for f32 (2 in-bufs + 2 out-bufs = 16 MiB
    # plus a few f32 intermediates, well under the 48 MiB limit below); 2 MiB
    # for 16-bit inputs so the f32 upcast temporaries stay comfortable on v5e.
    budget = (4 if itemsize >= 4 else 2) * 1024 * 1024

    # Preferred layout: full-width anchor block (block dim == full array dim is
    # always legal under the (8,128) rule -> no A padding, no extra HBM pass).
    tn_full = (budget // max(a * itemsize, 1)) // sub * sub
    if tn_full >= sub:
        ta = a
        tn = min(tn_full, _round_up(n, sub))
    else:
        # Very wide anchor axis: tile A at a 128-lane multiple instead.
        ta = max(128, (budget // (sub * itemsize)) // 128 * 128)
        ta = min(ta, _round_up(a, 128))
        tn = max(sub, (budget // (ta * itemsize)) // sub * sub)
        tn = min(tn, _round_up(n, sub))

    # v7x megacore: guarantee >=2 node-axis grid steps when each half is still a
    # healthy (>=512-row) tile, so the 'parallel' axis can shard across both
    # TensorCores. Harmless on single-TC v5e/v6e.
    half = _round_up(-(-n // 2), sub)
    if half >= 512:
        tn = min(tn, half)

    # If a single block covers all nodes, make it exactly full-dim (no ragged
    # tail at all); otherwise the ragged last block is masked by Pallas.
    if tn >= n:
        tn = n

    grid_n = pl.cdiv(n, tn)
    grid_a = pl.cdiv(a, ta)

    return pl.pallas_call(
        functools.partial(_anchor_ungsl_kernel, beta=beta),
        out_shape=jax.ShapeDtypeStruct((n, a), dtype),
        grid_spec=pltpu.PrefetchScalarGridSpec(
            num_scalar_prefetch=0,
            # N innermost so the (1, ta) confidence row block stays resident
            # across the whole node sweep of each anchor block.
            grid=(grid_a, grid_n),
            in_specs=[
                # learned_adj tile, streamed along N (and A when tiled).
                pl.BlockSpec((tn, ta), lambda j, i: (i, j)),
                # confidence row: same block for every inner (node) step.
                pl.BlockSpec((1, ta), lambda j, i: (0, j)),
                # per-node thresholds column.
                pl.BlockSpec((tn, 1), lambda j, i: (i, 0)),
            ],
            out_specs=pl.BlockSpec((tn, ta), lambda j, i: (i, j)),
        ),
        compiler_params=pltpu.CompilerParams(
            dimension_semantics=("parallel", "parallel"),
            vmem_limit_bytes=48 * 1024 * 1024,
        ),
    )(learned_adj, conf_row, thresholds)


def anchor_ungsl_forward(learned_adj, entropy, thresholds, anchor_node_idx=None,
                         beta: float = 0.1):
    """Full AnchorUnGSL.forward (dense path).

    learned_adj : (N, A) float array
    entropy     : (N,)  float array (the module's precomputed node entropy)
    thresholds  : (N, 1) float array (learnable per-node thresholds)
    anchor_node_idx : optional (A,) int array of anchor indices
    """
    # exp(-entropy) + gather done in f32 JAX glue (bf16 would underflow for
    # entropy >~ 9 and silently zero those anchors' edges).
    conf = jnp.exp(-entropy.astype(jnp.float32))
    if anchor_node_idx is not None:
        conf = jnp.take(conf, anchor_node_idx, axis=0)
    conf_row = conf.reshape(1, -1)
    thresholds = thresholds.reshape(-1, 1)
    # TODO(synk): torch sparse->dense->sparse round-trip has no Pallas
    # equivalent; this kernel covers the dense path only.
    return _anchor_ungsl_pallas(learned_adj, conf_row, thresholds,
                                beta=float(beta))


def anchor_ungsl_reference(learned_adj, entropy, thresholds, anchor_node_idx, beta):
    """Pure-JAX reference mirroring the PyTorch forward."""
    conf = jnp.exp(-entropy.astype(jnp.float32))
    if anchor_node_idx is not None:
        conf = conf[anchor_node_idx]
    adj = learned_adj.astype(jnp.float32)
    conf_mat = jnp.broadcast_to(conf[None, :], adj.shape)
    conf_mat = conf_mat * (adj >= 0).astype(jnp.float32)
    weights = jax.nn.sigmoid(conf_mat - thresholds.astype(jnp.float32)) / 0.5
    masks = jnp.where(weights >= 1.0, weights, jnp.float32(beta))
    return (adj * masks).astype(learned_adj.dtype)


if __name__ == "__main__":
    key = jax.random.PRNGKey(0)
    k_ent, k_adj, k_idx = jax.random.split(key, 3)

    num_nodes = 200          # N (graph nodes) — not a multiple of 8 (full-dim block path)
    num_anchors = 40         # A (anchor nodes) — not a multiple of 128 (full-width block)
    init_value = 0.5         # thresholds fill value (as in the module __init__)
    beta = 0.1               # self.Beta

    entropy = jax.random.uniform(k_ent, (num_nodes,), jnp.float32, 0.0, 3.0)
    thresholds = jnp.full((num_nodes, 1), init_value, jnp.float32)
    learned_adj = jax.random.normal(k_adj, (num_nodes, num_anchors), jnp.float32)
    anchor_node_idx = jax.random.randint(k_idx, (num_anchors,), 0, num_nodes)

    out = anchor_ungsl_forward(learned_adj, entropy, thresholds,
                               anchor_node_idx, beta=beta)
    out = jax.block_until_ready(out)

    ref = anchor_ungsl_reference(learned_adj, entropy, thresholds,
                                 anchor_node_idx, beta)
    assert out.shape == learned_adj.shape and out.dtype == learned_adj.dtype
    if not bool(jnp.allclose(out, ref, atol=1e-5, rtol=1e-5)):
        max_err = float(jnp.max(jnp.abs(out - ref)))
        raise AssertionError(f"Pallas kernel mismatch vs reference, max abs err = {max_err}")

    print("KERNEL_OK")
</pallas_src>

<mosaic_0001>
module attributes {stable_mosaic.version = 11 : i64} {
  func.func @_anchor_ungsl_kernel(%arg0: i32, %arg1: i32, %arg2: memref<200x40xf32, #tpu.memory_space<vmem>>, %arg3: memref<1x40xf32, #tpu.memory_space<vmem>>, %arg4: memref<200x1xf32, #tpu.memory_space<vmem>>, %arg5: memref<200x40xf32, #tpu.memory_space<vmem>>) attributes {dimension_semantics = [#tpu.dimension_semantics<parallel>, #tpu.dimension_semantics<parallel>], iteration_bounds = array<i64: 1, 1>, scalar_prefetch = 0 : i64, scratch_operands = 0 : i64, tpu.core_type = #tpu.core_type<tc>, window_params = [{transform_indices = @transform_0, window_bounds = array<i64: 200, 40>}, {transform_indices = @transform_1, window_bounds = array<i64: 1, 40>}, {transform_indices = @transform_2, window_bounds = array<i64: 200, 1>}, {transform_indices = @transform_3, window_bounds = array<i64: 200, 40>}]} {
    %c0 = arith.constant 0 : index
    %c0_0 = arith.constant 0 : index
    %0 = vector.load %arg2[%c0, %c0_0] : memref<200x40xf32, #tpu.memory_space<vmem>>, vector<200x40xf32>
    %c0_1 = arith.constant 0 : index
    %c0_2 = arith.constant 0 : index
    %1 = vector.load %arg3[%c0_1, %c0_2] : memref<1x40xf32, #tpu.memory_space<vmem>>, vector<1x40xf32>
    %c0_3 = arith.constant 0 : index
    %c0_4 = arith.constant 0 : index
    %2 = vector.load %arg4[%c0_3, %c0_4] : memref<200x1xf32, #tpu.memory_space<vmem>>, vector<200x1xf32>
    %cst = arith.constant 0.000000e+00 : f32
    %3 = vector.broadcast %cst : f32 to vector<200x40xf32>
    %4 = arith.cmpf oge, %0, %3 : vector<200x40xf32>
    %cst_5 = arith.constant 0.000000e+00 : f32
    %5 = vector.shape_cast %1 : vector<1x40xf32> to vector<1x40xf32>
    %6 = vector.broadcast %5 : vector<1x40xf32> to vector<200x40xf32>
    %7 = vector.broadcast %cst_5 : f32 to vector<200x40xf32>
    %8 = arith.select %4, %6, %7 : vector<200x40xi1>, vector<200x40xf32>
    %9 = vector.broadcast %2 : vector<200x1xf32> to vector<200x40xf32>
    %10 = arith.subf %8, %9 : vector<200x40xf32>
    %11 = arith.negf %10 : vector<200x40xf32>
    %12 = math.exp %11 : vector<200x40xf32>
    %cst_6 = arith.constant 1.000000e+00 : f32
    %13 = vector.broadcast %cst_6 : f32 to vector<200x40xf32>
    %14 = arith.addf %13, %12 : vector<200x40xf32>
    %15 = arith.divf %13, %14 : vector<200x40xf32>
    %cst_7 = arith.constant 2.000000e+00 : f32
    %16 = vector.broadcast %cst_7 : f32 to vector<200x40xf32>
    %17 = arith.mulf %16, %15 : vector<200x40xf32>
    %18 = vector.broadcast %2 : vector<200x1xf32> to vector<200x40xf32>
    %19 = arith.cmpf oge, %8, %18 : vector<200x40xf32>
    %cst_8 = arith.constant 1.000000e-01 : f32
    %20 = vector.broadcast %cst_8 : f32 to vector<200x40xf32>
    %21 = arith.select %19, %17, %20 : vector<200x40xi1>, vector<200x40xf32>
    %22 = arith.mulf %0, %21 : vector<200x40xf32>
    %c0_9 = arith.constant 0 : index
    %c0_10 = arith.constant 0 : index
    %23 = vector.load %arg5[%c0_9, %c0_10] : memref<200x40xf32, #tpu.memory_space<vmem>>, vector<200x40xf32>
    tpu.vector_store %arg5[%c0_9, %c0_10], %22 {strides = array<i32>} : memref<200x40xf32, #tpu.memory_space<vmem>>, vector<200x40xf32>,
    return
  }
  func.func @transform_0(%arg0: i32, %arg1: i32) -> (i32, i32) {
    %c0_i32 = arith.constant 0 : i32
    return %arg1, %arg0 : i32, i32
  }
  func.func @transform_1(%arg0: i32, %arg1: i32) -> (i32, i32) {
    %c0_i32 = arith.constant 0 : i32
    %c0_i32_0 = arith.constant 0 : i32
    return %c0_i32, %arg0 : i32, i32
  }
  func.func @transform_2(%arg0: i32, %arg1: i32) -> (i32, i32) {
    %c0_i32 = arith.constant 0 : i32
    %c0_i32_0 = arith.constant 0 : i32
    return %arg1, %c0_i32 : i32, i32
  }
  func.func @transform_3(%arg0: i32, %arg1: i32) -> (i32, i32) {
    %c0_i32 = arith.constant 0 : i32
    return %arg1, %arg0 : i32, i32
  }
}

</mosaic_0001>

<llo_original>
// kernel: _anchor_ungsl_pallas.1
$region0: #{_anchor_ungsl_pallas.1}
  #allocation0 [shape = 'u32[]', space=smem, size = 0x4, offset = 0x4, fixed_abs, tag = 'smem constant byte address 0x4 - core index']
  #allocation1 [shape = 'u32[72,128]{1,0:T(1,128)}', space=vmem, size = 0x9000, scoped, tag = 'internal scratch']
  %s0 = inlined_call_operand.vmem [shape: f32[200,40], index: 0, kind: input, shape index: {}]
  %s1 = inlined_call_operand.vmem [shape: f32[1,40], index: 1, kind: input, shape index: {}]
  %s2 = inlined_call_operand.vmem [shape: f32[200,1], index: 2, kind: input, shape index: {}]
  %s3 = inlined_call_operand.vmem [shape: f32[200,40], index: 3, kind: output, shape index: {}]
  %s4 = sld [smem:[#allocation0]]
  $region22: #{_anchor_ungsl_pallas.1} parent=0
    _
  %s6 = ssub.s32 1, %s4
  %s7 = scalar_select 0, %s6, %s4
  // Predicated region
  $region2: #{_anchor_ungsl_pallas.1} parent=0 // pred_check
    _
  $region3: #{_anchor_ungsl_pallas.1} parent=0 // pred_check_branch
    %9 = sbr.rel (0) target = $region5
  $region4: #{_anchor_ungsl_pallas.1} parent=0 // pred_region
    _
  $region5: #{_anchor_ungsl_pallas.1} parent=0 // pred_fallthru
    _
  // Predicated region
  $region6: #{_anchor_ungsl_pallas.1} parent=0 // pred_check
    _
  $region7: #{_anchor_ungsl_pallas.1} parent=0 // pred_check_branch
    %11 = sbr.rel (0) target = $region9
  $region8: #{_anchor_ungsl_pallas.1} parent=0 // pred_region
    _
  $region9: #{_anchor_ungsl_pallas.1} parent=0 // pred_fallthru
    _
  // Predicated region
  $region10: #{_anchor_ungsl_pallas.1} parent=0 // pred_check
    _
  $region11: #{_anchor_ungsl_pallas.1} parent=0 // pred_check_branch
    %13 = sbr.rel (0) target = $region13
  $region12: #{_anchor_ungsl_pallas.1} parent=0 // pred_region
    _
  $region13: #{_anchor_ungsl_pallas.1} parent=0 // pred_fallthru
    _
  %v14 = vld [vmem:[%s0] sm:$0xff]
  %v15 = vld [vmem:[%s0 + $0x8] sm:$0xff]
  %v16 = vld [vmem:[%s0 + $0x10] sm:$0xff]
  %v17 = vld [vmem:[%s0 + $0x18] sm:$0xff]
  %v18 = vld [vmem:[%s0 + $0x20] sm:$0xff]
  %v19 = vld [vmem:[%s0 + $0x28] sm:$0xff]
  %v20 = vld [vmem:[%s0 + $0x30] sm:$0xff]
  %v21 = vld [vmem:[%s0 + $0x38] sm:$0xff]
  %v22 = vld [vmem:[%s0 + $0x40] sm:$0xff]
  %v23 = vld [vmem:[%s0 + $0x48] sm:$0xff]
  %v24 = vld [vmem:[%s0 + $0x50] sm:$0xff]
  %v25 = vld [vmem:[%s0 + $0x58] sm:$0xff]
  %v26 = vld [vmem:[%s0 + $0x60] sm:$0xff]
  %v27 = vld [vmem:[%s0 + $0x68] sm:$0xff]
  %v28 = vld [vmem:[%s0 + $0x70] sm:$0xff]
  %v29 = vld [vmem:[%s0 + $0x78] sm:$0xff]
  %v30 = vld [vmem:[%s0 + $0x80] sm:$0xff]
  %v31 = vld [vmem:[%s0 + $0x88] sm:$0xff]
  %v32 = vld [vmem:[%s0 + $0x90] sm:$0xff]
  %v33 = vld [vmem:[%s0 + $0x98] sm:$0xff]
  %v34 = vld [vmem:[%s0 + $0xa0] sm:$0xff]
  %v35 = vld [vmem:[%s0 + $0xa8] sm:$0xff]
  %v36 = vld [vmem:[%s0 + $0xb0] sm:$0xff]
  %v37 = vld [vmem:[%s0 + $0xb8] sm:$0xff]
  %v38 = vld [vmem:[%s0 + $0xc0] sm:$0xff]
  %v39 = vld [vmem:[%s1] sm:$0x1]
  %v40 = vld [vmem:[%s2] sm:$0xff]
  %v41 = vld [vmem:[%s2 + $0x8] sm:$0xff]
  %v42 = vld [vmem:[%s2 + $0x10] sm:$0xff]
  %v43 = vld [vmem:[%s2 + $0x18] sm:$0xff]
  %v44 = vld [vmem:[%s2 + $0x20] sm:$0xff]
  %v45 = vld [vmem:[%s2 + $0x28] sm:$0xff]
  %v46 = vld [vmem:[%s2 + $0x30] sm:$0xff]
  %v47 = vld [vmem:[%s2 + $0x38] sm:$0xff]
  %v48 = vld [vmem:[%s2 + $0x40] sm:$0xff]
  %v49 = vld [vmem:[%s2 + $0x48] sm:$0xff]
  %v50 = vld [vmem:[%s2 + $0x50] sm:$0xff]
  %v51 = vld [vmem:[%s2 + $0x58] sm:$0xff]
  %v52 = vld [vmem:[%s2 + $0x60] sm:$0xff]
  %v53 = vld [vmem:[%s2 + $0x68] sm:$0xff]
  %v54 = vld [vmem:[%s2 + $0x70] sm:$0xff]
  %v55 = vld [vmem:[%s2 + $0x78] sm:$0xff]
  %v56 = vld [vmem:[%s2 + $0x80] sm:$0xff]
  %v57 = vld [vmem:[%s2 + $0x88] sm:$0xff]
  %v58 = vld [vmem:[%s2 + $0x90] sm:$0xff]
  %v59 = vld [vmem:[%s2 + $0x98] sm:$0xff]
  %v60 = vld [vmem:[%s2 + $0xa0] sm:$0xff]
  %v61 = vld [vmem:[%s2 + $0xa8] sm:$0xff]
  %v62 = vld [vmem:[%s2 + $0xb0] sm:$0xff]
  %v63 = vld [vmem:[%s2 + $0xb8] sm:$0xff]
  %v64 = vld [vmem:[%s2 + $0xc0] sm:$0xff]
  %vm65 = vcmp.ge.f32.partialorder %v14, 0.0
  %vm66 = vcmp.ge.f32.partialorder %v15, 0.0
  %vm67 = vcmp.ge.f32.partialorder %v16, 0.0
  %vm68 = vcmp.ge.f32.partialorder %v17, 0.0
  %vm69 = vcmp.ge.f32.partialorder %v18, 0.0
  %vm70 = vcmp.ge.f32.partialorder %v19, 0.0
  %vm71 = vcmp.ge.f32.partialorder %v20, 0.0
  %vm72 = vcmp.ge.f32.partialorder %v21, 0.0
  %vm73 = vcmp.ge.f32.partialorder %v22, 0.0
  %vm74 = vcmp.ge.f32.partialorder %v23, 0.0
  %vm75 = vcmp.ge.f32.partialorder %v24, 0.0
  %vm76 = vcmp.ge.f32.partialorder %v25, 0.0
  %vm77 = vcmp.ge.f32.partialorder %v26, 0.0
  %vm78 = vcmp.ge.f32.partialorder %v27, 0.0
  %vm79 = vcmp.ge.f32.partialorder %v28, 0.0
  %vm80 = vcmp.ge.f32.partialorder %v29, 0.0
  %vm81 = vcmp.ge.f32.partialorder %v30, 0.0
  %vm82 = vcmp.ge.f32.partialorder %v31, 0.0
  %vm83 = vcmp.ge.f32.partialorder %v32, 0.0
  %vm84 = vcmp.ge.f32.partialorder %v33, 0.0
  %vm85 = vcmp.ge.f32.partialorder %v34, 0.0
  %vm86 = vcmp.ge.f32.partialorder %v35, 0.0
  %vm87 = vcmp.ge.f32.partialorder %v36, 0.0
  %vm88 = vcmp.ge.f32.partialorder %v37, 0.0
  %vm89 = vcmp.ge.f32.partialorder %v38, 0.0
  %v91 = vperm.slane %v39, 0
  %v93 = vsel %vm65, %v91, 0.0
  %v94 = vsel %vm66, %v91, 0.0
  %v95 = vsel %vm67, %v91, 0.0
  %v96 = vsel %vm68, %v91, 0.0
  %v97 = vsel %vm69, %v91, 0.0
  %v98 = vsel %vm70, %v91, 0.0
  %v99 = vsel %vm71, %v91, 0.0
  %v100 = vsel %vm72, %v91, 0.0
  %v101 = vsel %vm73, %v91, 0.0
  %v102 = vsel %vm74, %v91, 0.0
  %v103 = vsel %vm75, %v91, 0.0
  %v104 = vsel %vm76, %v91, 0.0
  %v105 = vsel %vm77, %v91, 0.0
  %v106 = vsel %vm78, %v91, 0.0
  %v107 = vsel %vm79, %v91, 0.0
  %v108 = vsel %vm80, %v91, 0.0
  %v109 = vsel %vm81, %v91, 0.0
  %v110 = vsel %vm82, %v91, 0.0
  %v111 = vsel %vm83, %v91, 0.0
  %v112 = vsel %vm84, %v91, 0.0
  %v113 = vsel %vm85, %v91, 0.0
  %v114 = vsel %vm86, %v91, 0.0
  %v115 = vsel %vm87, %v91, 0.0
  %v116 = vsel %vm88, %v91, 0.0
  %v117 = vsel %vm89, %v91, 0.0
  %119 = vset.pattern.permute.xlu0 0
  %120 = vperm.xlu0 %119, %v40
  %v121 = vpop.permute.xlu0 %120
  %124 = vset.pattern.permute.xlu0 0
  %125 = vperm.xlu0 %124, %v41
  %v126 = vpop.permute.xlu0 %125
  %129 = vset.pattern.permute.xlu0 0
  %130 = vperm.xlu0 %129, %v42
  %v131 = vpop.permute.xlu0 %130
  %134 = vset.pattern.permute.xlu0 0
  %135 = vperm.xlu0 %134, %v43
  %v136 = vpop.permute.xlu0 %135
  %139 = vset.pattern.permute.xlu0 0
  %140 = vperm.xlu0 %139, %v44
  %v141 = vpop.permute.xlu0 %140
  %144 = vset.pattern.permute.xlu0 0
  %145 = vperm.xlu0 %144, %v45
  %v146 = vpop.permute.xlu0 %145
  %149 = vset.pattern.permute.xlu0 0
  %150 = vperm.xlu0 %149, %v46
  %v151 = vpop.permute.xlu0 %150
  %154 = vset.pattern.permute.xlu0 0
  %155 = vperm.xlu0 %154, %v47
  %v156 = vpop.permute.xlu0 %155
  %159 = vset.pattern.permute.xlu0 0
  %160 = vperm.xlu0 %159, %v48
  %v161 = vpop.permute.xlu0 %160
  %164 = vset.pattern.permute.xlu0 0
  %165 = vperm.xlu0 %164, %v49
  %v166 = vpop.permute.xlu0 %165
  %169 = vset.pattern.permute.xlu0 0
  %170 = vperm.xlu0 %169, %v50
  %v171 = vpop.permute.xlu0 %170
  %174 = vset.pattern.permute.xlu0 0
  %175 = vperm.xlu0 %174, %v51
  %v176 = vpop.permute.xlu0 %175
  %179 = vset.pattern.permute.xlu0 0
  %180 = vperm.xlu0 %179, %v52
  %v181 = vpop.permute.xlu0 %180
  %184 = vset.pattern.permute.xlu0 0
  %185 = vperm.xlu0 %184, %v53
  %v186 = vpop.permute.xlu0 %185
  %189 = vset.pattern.permute.xlu0 0
  %190 = vperm.xlu0 %189, %v54
  %v191 = vpop.permute.xlu0 %190
  %194 = vset.pattern.permute.xlu0 0
  %195 = vperm.xlu0 %194, %v55
  %v196 = vpop.permute.xlu0 %195
  %199 = vset.pattern.permute.xlu0 0
  %200 = vperm.xlu0 %199, %v56
  %v201 = vpop.permute.xlu0 %200
  %204 = vset.pattern.permute.xlu0 0
  %205 = vperm.xlu0 %204, %v57
  %v206 = vpop.permute.xlu0 %205
  %209 = vset.pattern.permute.xlu0 0
  %210 = vperm.xlu0 %209, %v58
  %v211 = vpop.permute.xlu0 %210
  %214 = vset.pattern.permute.xlu0 0
  %215 = vperm.xlu0 %214, %v59
  %v216 = vpop.permute.xlu0 %215
  %219 = vset.pattern.permute.xlu0 0
  %220 = vperm.xlu0 %219, %v60
  %v221 = vpop.permute.xlu0 %220
  %224 = vset.pattern.permute.xlu0 0
  %225 = vperm.xlu0 %224, %v61
  %v226 = vpop.permute.xlu0 %225
  %229 = vset.pattern.permute.xlu0 0
  %230 = vperm.xlu0 %229, %v62
  %v231 = vpop.permute.xlu0 %230
  %234 = vset.pattern.permute.xlu0 0
  %235 = vperm.xlu0 %234, %v63
  %v236 = vpop.permute.xlu0 %235
  %239 = vset.pattern.permute.xlu0 0
  %240 = vperm.xlu0 %239, %v64
  %v241 = vpop.permute.xlu0 %240
  %v243 = vsub.f32 %v93, %v121
  %v244 = vsub.f32 %v94, %v126
  %v245 = vsub.f32 %v95, %v131
  %v246 = vsub.f32 %v96, %v136
  %v247 = vsub.f32 %v97, %v141
  %v248 = vsub.f32 %v98, %v146
  %v249 = vsub.f32 %v99, %v151
  %v250 = vsub.f32 %v100, %v156
  %v251 = vsub.f32 %v101, %v161
  %v252 = vsub.f32 %v102, %v166
  %v253 = vsub.f32 %v103, %v171
  %v254 = vsub.f32 %v104, %v176
  %v255 = vsub.f32 %v105, %v181
  %v256 = vsub.f32 %v106, %v186
  %v257 = vsub.f32 %v107, %v191
  %v258 = vsub.f32 %v108, %v196
  %v259 = vsub.f32 %v109, %v201
  %v260 = vsub.f32 %v110, %v206
  %v261 = vsub.f32 %v111, %v211
  %v262 = vsub.f32 %v112, %v216
  %v263 = vsub.f32 %v113, %v221
  %v264 = vsub.f32 %v114, %v226
  %v265 = vsub.f32 %v115, %v231
  %v266 = vsub.f32 %v116, %v236
  %v267 = vsub.f32 %v117, %v241
  %v268 = vxor.u32 %v243, 2147483648
  %v269 = vxor.u32 %v244, 2147483648
  %v270 = vxor.u32 %v245, 2147483648
  %v271 = vxor.u32 %v246, 2147483648
  %v272 = vxor.u32 %v247, 2147483648
  %v273 = vxor.u32 %v248, 2147483648
  %v274 = vxor.u32 %v249, 2147483648
  %v275 = vxor.u32 %v250, 2147483648
  %v276 = vxor.u32 %v251, 2147483648
  %v277 = vxor.u32 %v252, 2147483648
  %v278 = vxor.u32 %v253, 2147483648
  %v279 = vxor.u32 %v254, 2147483648
  %v280 = vxor.u32 %v255, 2147483648
  %v281 = vxor.u32 %v256, 2147483648
  %v282 = vxor.u32 %v257, 2147483648
  %v283 = vxor.u32 %v258, 2147483648
  %v284 = vxor.u32 %v259, 2147483648
  %v285 = vxor.u32 %v260, 2147483648
  %v286 = vxor.u32 %v261, 2147483648
  %v287 = vxor.u32 %v262, 2147483648
  %v288 = vxor.u32 %v263, 2147483648
  %v289 = vxor.u32 %v264, 2147483648
  %v290 = vxor.u32 %v265, 2147483648
  %v291 = vxor.u32 %v266, 2147483648
  %v292 = vxor.u32 %v267, 2147483648
  %v293 = vmul.f32 %v268, 1.442695
  %v294 = vpow.pop %v293
  %v295 = vmul.f32 %v269, 1.442695
  %v296 = vpow.pop %v295
  %v297 = vmul.f32 %v270, 1.442695
  %v298 = vpow.pop %v297
  %v299 = vmul.f32 %v271, 1.442695
  %v300 = vpow.pop %v299
  %v301 = vmul.f32 %v272, 1.442695
  %v302 = vpow.pop %v301
  %v303 = vmul.f32 %v273, 1.442695
  %v304 = vpow.pop %v303
  %v305 = vmul.f32 %v274, 1.442695
  %v306 = vpow.pop %v305
  %v307 = vmul.f32 %v275, 1.442695
  %v308 = vpow.pop %v307
  %v309 = vmul.f32 %v276, 1.442695
  %v310 = vpow.pop %v309
  %v311 = vmul.f32 %v277, 1.442695
  %v312 = vpow.pop %v311
  %v313 = vmul.f32 %v278, 1.442695
  %v314 = vpow.pop %v313
  %v315 = vmul.f32 %v279, 1.442695
  %v316 = vpow.pop %v315
  %v317 = vmul.f32 %v280, 1.442695
  %v318 = vpow.pop %v317
  %v319 = vmul.f32 %v281, 1.442695
  %v320 = vpow.pop %v319
  %v321 = vmul.f32 %v282, 1.442695
  %v322 = vpow.pop %v321
  %v323 = vmul.f32 %v283, 1.442695
  %v324 = vpow.pop %v323
  %v325 = vmul.f32 %v284, 1.442695
  %v326 = vpow.pop %v325
  %v327 = vmul.f32 %v285, 1.442695
  %v328 = vpow.pop %v327
  %v329 = vmul.f32 %v286, 1.442695
  %v330 = vpow.pop %v329
  %v331 = vmul.f32 %v287, 1.442695
  %v332 = vpow.pop %v331
  %v333 = vmul.f32 %v288, 1.442695
  %v334 = vpow.pop %v333
  %v335 = vmul.f32 %v289, 1.442695
  %v336 = vpow.pop %v335
  %v337 = vmul.f32 %v290, 1.442695
  %v338 = vpow.pop %v337
  %v339 = vmul.f32 %v291, 1.442695
  %v340 = vpow.pop %v339
  %v341 = vmul.f32 %v292, 1.442695
  %v342 = vpow.pop %v341
  %v343 = vadd.f32 %v294, 1.0
  %v344 = vadd.f32 %v296, 1.0
  %v345 = vadd.f32 %v298, 1.0
  %v346 = vadd.f32 %v300, 1.0
  %v347 = vadd.f32 %v302, 1.0
  %v348 = vadd.f32 %v304, 1.0
  %v349 = vadd.f32 %v306, 1.0
  %v350 = vadd.f32 %v308, 1.0
  %v351 = vadd.f32 %v310, 1.0
  %v352 = vadd.f32 %v312, 1.0
  %v353 = vadd.f32 %v314, 1.0
  %v354 = vadd.f32 %v316, 1.0
  %v355 = vadd.f32 %v318, 1.0
  %v356 = vadd.f32 %v320, 1.0
  %v357 = vadd.f32 %v322, 1.0
  %v358 = vadd.f32 %v324, 1.0
  %v359 = vadd.f32 %v326, 1.0
  %v360 = vadd.f32 %v328, 1.0
  %v361 = vadd.f32 %v330, 1.0
  %v362 = vadd.f32 %v332, 1.0
  %v363 = vadd.f32 %v334, 1.0
  %v364 = vadd.f32 %v336, 1.0
  %v365 = vadd.f32 %v338, 1.0
  %v366 = vadd.f32 %v340, 1.0
  %v367 = vadd.f32 %v342, 1.0
  %v368 = vrcp.pop %v343
  %v369 = vmul.f32 %v343, %v368
  %v370 = vsub.f32 1.0, %v369
  %v371 = vmul.f32 %v368, %v370
  %v372 = vadd.f32 %v368, %v371
  %vm373 = vweird.f32 %v343
  %vm374 = vweird.f32 %v368
  %vm375 = vmor %vm373, %vm374
  %v376 = vsel %vm375, %v368, %v372
  %v377 = vand.u32 2147483647, %v343
  %vm378 = vcmp.eq.f32.partialorder %v377, 8.507059e+37
  %v379 = vand.u32 %v343, 2147483648
  %v380 = vor.u32 1.1754944e-38, %v379
  %v381 = vsel %vm378, %v380, %v376
  %v382 = vmul.f32 1.0, %v381
  %v383 = vrcp.pop %v344
  %v384 = vmul.f32 %v344, %v383
  %v385 = vsub.f32 1.0, %v384
  %v386 = vmul.f32 %v383, %v385
  %v387 = vadd.f32 %v383, %v386
  %vm388 = vweird.f32 %v344
  %vm389 = vweird.f32 %v383
  %vm390 = vmor %vm388, %vm389
  %v391 = vsel %vm390, %v383, %v387
  %v392 = vand.u32 2147483647, %v344
  %vm393 = vcmp.eq.f32.partialorder %v392, 8.507059e+37
  %v394 = vand.u32 %v344, 2147483648
  %v395 = vor.u32 1.1754944e-38, %v394
  %v396 = vsel %vm393, %v395, %v391
  %v397 = vmul.f32 1.0, %v396
  %v398 = vrcp.pop %v345
  %v399 = vmul.f32 %v345, %v398
  %v400 = vsub.f32 1.0, %v399
  %v401 = vmul.f32 %v398, %v400
  %v402 = vadd.f32 %v398, %v401
  %vm403 = vweird.f32 %v345
  %vm404 = vweird.f32 %v398
  %vm405 = vmor %vm403, %vm404
  %v406 = vsel %vm405, %v398, %v402
  %v407 = vand.u32 2147483647, %v345
  %vm408 = vcmp.eq.f32.partialorder %v407, 8.507059e+37
  %v409 = vand.u32 %v345, 2147483648
  %v410 = vor.u32 1.1754944e-38, %v409
  %v411 = vsel %vm408, %v410, %v406
  %v412 = vmul.f32 1.0, %v411
  %v413 = vrcp.pop %v346
  %v414 = vmul.f32 %v346, %v413
  %v415 = vsub.f32 1.0, %v414
  %v416 = vmul.f32 %v413, %v415
  %v417 = vadd.f32 %v413, %v416
  %vm418 = vweird.f32 %v346
  %vm419 = vweird.f32 %v413
  %vm420 = vmor %vm418, %vm419
  %v421 = vsel %vm420, %v413, %v417
  %v422 = vand.u32 2147483647, %v346
  %vm423 = vcmp.eq.f32.partialorder %v422, 8.507059e+37
  %v424 = vand.u32 %v346, 2147483648
  %v425 = vor.u32 1.1754944e-38, %v424
  %v426 = vsel %vm423, %v425, %v421
  %v427 = vmul.f32 1.0, %v426
  %v428 = vrcp.pop %v347
  %v429 = vmul.f32 %v347, %v428
  %v430 = vsub.f32 1.0, %v429
  %v431 = vmul.f32 %v428, %v430
  %v432 = vadd.f32 %v428, %v431
  %vm433 = vweird.f32 %v347
  %vm434 = vweird.f32 %v428
  %vm435 = vmor %vm433, %vm434
  %v436 = vsel %vm435, %v428, %v432
  %v437 = vand.u32 2147483647, %v347
  %vm438 = vcmp.eq.f32.partialorder %v437, 8.507059e+37
  %v439 = vand.u32 %v347, 2147483648
  %v440 = vor.u32 1.1754944e-38, %v439
  %v441 = vsel %vm438, %v440, %v436
  %v442 = vmul.f32 1.0, %v441
  %v443 = vrcp.pop %v348
  %v444 = vmul.f32 %v348, %v443
  %v445 = vsub.f32 1.0, %v444
  %v446 = vmul.f32 %v443, %v445
  %v447 = vadd.f32 %v443, %v446
  %vm448 = vweird.f32 %v348
  %vm449 = vweird.f32 %v443
  %vm450 = vmor %vm448, %vm449
  %v451 = vsel %vm450, %v443, %v447
  %v452 = vand.u32 2147483647, %v348
  %vm453 = vcmp.eq.f32.partialorder %v452, 8.507059e+37
  %v454 = vand.u32 %v348, 2147483648
  %v455 = vor.u32 1.1754944e-38, %v454
  %v456 = vsel %vm453, %v455, %v451
  %v457 = vmul.f32 1.0, %v456
  %v458 = vrcp.pop %v349
  %v459 = vmul.f32 %v349, %v458
  %v460 = vsub.f32 1.0, %v459
  %v461 = vmul.f32 %v458, %v460
  %v462 = vadd.f32 %v458, %v461
  %vm463 = vweird.f32 %v349
  %vm464 = vweird.f32 %v458
  %vm465 = vmor %vm463, %vm464
  %v466 = vsel %vm465, %v458, %v462
  %v467 = vand.u32 2147483647, %v349
  %vm468 = vcmp.eq.f32.partialorder %v467, 8.507059e+37
  %v469 = vand.u32 %v349, 2147483648
  %v470 = vor.u32 1.1754944e-38, %v469
  %v471 = vsel %vm468, %v470, %v466
  %v472 = vmul.f32 1.0, %v471
  %v473 = vrcp.pop %v350
  %v474 = vmul.f32 %v350, %v473
  %v475 = vsub.f32 1.0, %v474
  %v476 = vmul.f32 %v473, %v475
  %v477 = vadd.f32 %v473, %v476
  %vm478 = vweird.f32 %v350
  %vm479 = vweird.f32 %v473
  %vm480 = vmor %vm478, %vm479
  %v481 = vsel %vm480, %v473, %v477
  %v482 = vand.u32 2147483647, %v350
  %vm483 = vcmp.eq.f32.partialorder %v482, 8.507059e+37
  %v484 = vand.u32 %v350, 2147483648
  %v485 = vor.u32 1.1754944e-38, %v484
  %v486 = vsel %vm483, %v485, %v481
  %v487 = vmul.f32 1.0, %v486
  %v488 = vrcp.pop %v351
  %v489 = vmul.f32 %v351, %v488
  %v490 = vsub.f32 1.0, %v489
  %v491 = vmul.f32 %v488, %v490
  %v492 = vadd.f32 %v488, %v491
  %vm493 = vweird.f32 %v351
  %vm494 = vweird.f32 %v488
  %vm495 = vmor %vm493, %vm494
  %v496 = vsel %vm495, %v488, %v492
  %v497 = vand.u32 2147483647, %v351
  %vm498 = vcmp.eq.f32.partialorder %v497, 8.507059e+37
  %v499 = vand.u32 %v351, 2147483648
  %v500 = vor.u32 1.1754944e-38, %v499
  %v501 = vsel %vm498, %v500, %v496
  %v502 = vmul.f32 1.0, %v501
  %v503 = vrcp.pop %v352
  %v504 = vmul.f32 %v352, %v503
  %v505 = vsub.f32 1.0, %v504
  %v506 = vmul.f32 %v503, %v505
  %v507 = vadd.f32 %v503, %v506
  %vm508 = vweird.f32 %v352
  %vm509 = vweird.f32 %v503
  %vm510 = vmor %vm508, %vm509
  %v511 = vsel %vm510, %v503, %v507
  %v512 = vand.u32 2147483647, %v352
  %vm513 = vcmp.eq.f32.partialorder %v512, 8.507059e+37
  %v514 = vand.u32 %v352, 2147483648
  %v515 = vor.u32 1.1754944e-38, %v514
  %v516 = vsel %vm513, %v515, %v511
  %v517 = vmul.f32 1.0, %v516
  %v518 = vrcp.pop %v353
  %v519 = vmul.f32 %v353, %v518
  %v520 = vsub.f32 1.0, %v519
  %v521 = vmul.f32 %v518, %v520
  %v522 = vadd.f32 %v518, %v521
  %vm523 = vweird.f32 %v353
  %vm524 = vweird.f32 %v518
  %vm525 = vmor %vm523, %vm524
  %v526 = vsel %vm525, %v518, %v522
  %v527 = vand.u32 2147483647, %v353
  %vm528 = vcmp.eq.f32.partialorder %v527, 8.507059e+37
  %v529 = vand.u32 %v353, 2147483648
  %v530 = vor.u32 1.1754944e-38, %v529
  %v531 = vsel %vm528, %v530, %v526
  %v532 = vmul.f32 1.0, %v531
  %v533 = vrcp.pop %v354
  %v534 = vmul.f32 %v354, %v533
  %v535 = vsub.f32 1.0, %v534
  %v536 = vmul.f32 %v533, %v535
  %v537 = vadd.f32 %v533, %v536
  %vm538 = vweird.f32 %v354
  %vm539 = vweird.f32 %v533
  %vm540 = vmor %vm538, %vm539
  %v541 = vsel %vm540, %v533, %v537
  %v542 = vand.u32 2147483647, %v354
  %vm543 = vcmp.eq.f32.partialorder %v542, 8.507059e+37
  %v544 = vand.u32 %v354, 2147483648
  %v545 = vor.u32 1.1754944e-38, %v544
  %v546 = vsel %vm543, %v545, %v541
  %v547 = vmul.f32 1.0, %v546
  %v548 = vrcp.pop %v355
  %v549 = vmul.f32 %v355, %v548
  %v550 = vsub.f32 1.0, %v549
  %v551 = vmul.f32 %v548, %v550
  %v552 = vadd.f32 %v548, %v551
  %vm553 = vweird.f32 %v355
  %vm554 = vweird.f32 %v548
  %vm555 = vmor %vm553, %vm554
  %v556 = vsel %vm555, %v548, %v552
  %v557 = vand.u32 2147483647, %v355
  %vm558 = vcmp.eq.f32.partialorder %v557, 8.507059e+37
  %v559 = vand.u32 %v355, 2147483648
  %v560 = vor.u32 1.1754944e-38, %v559
  %v561 = vsel %vm558, %v560, %v556
  %v562 = vmul.f32 1.0, %v561
  %v563 = vrcp.pop %v356
  %v564 = vmul.f32 %v356, %v563
  %v565 = vsub.f32 1.0, %v564
  %v566 = vmul.f32 %v563, %v565
  %v567 = vadd.f32 %v563, %v566
  %vm568 = vweird.f32 %v356
  %vm569 = vweird.f32 %v563
  %vm570 = vmor %vm568, %vm569
  %v571 = vsel %vm570, %v563, %v567
  %v572 = vand.u32 2147483647, %v356
  %vm573 = vcmp.eq.f32.partialorder %v572, 8.507059e+37
  %v574 = vand.u32 %v356, 2147483648
  %v575 = vor.u32 1.1754944e-38, %v574
  %v576 = vsel %vm573, %v575, %v571
  %v577 = vmul.f32 1.0, %v576
  %v578 = vrcp.pop %v357
  %v579 = vmul.f32 %v357, %v578
  %v580 = vsub.f32 1.0, %v579
  %v581 = vmul.f32 %v578, %v580
  %v582 = vadd.f32 %v578, %v581
  %vm583 = vweird.f32 %v357
  %vm584 = vweird.f32 %v578
  %vm585 = vmor %vm583, %vm584
  %v586 = vsel %vm585, %v578, %v582
  %v587 = vand.u32 2147483647, %v357
  %vm588 = vcmp.eq.f32.partialorder %v587, 8.507059e+37
  %v589 = vand.u32 %v357, 2147483648
  %v590 = vor.u32 1.1754944e-38, %v589
  %v591 = vsel %vm588, %v590, %v586
  %v592 = vmul.f32 1.0, %v591
  %v593 = vrcp.pop %v358
  %v594 = vmul.f32 %v358, %v593
  %v595 = vsub.f32 1.0, %v594
  %v596 = vmul.f32 %v593, %v595
  %v597 = vadd.f32 %v593, %v596
  %vm598 = vweird.f32 %v358
  %vm599 = vweird.f32 %v593
  %vm600 = vmor %vm598, %vm599
  %v601 = vsel %vm600, %v593, %v597
  %v602 = vand.u32 2147483647, %v358
  %vm603 = vcmp.eq.f32.partialorder %v602, 8.507059e+37
  %v604 = vand.u32 %v358, 2147483648
  %v605 = vor.u32 1.1754944e-38, %v604
  %v606 = vsel %vm603, %v605, %v601
  %v607 = vmul.f32 1.0, %v606
  %v608 = vrcp.pop %v359
  %v609 = vmul.f32 %v359, %v608
  %v610 = vsub.f32 1.0, %v609
  %v611 = vmul.f32 %v608, %v610
  %v612 = vadd.f32 %v608, %v611
  %vm613 = vweird.f32 %v359
  %vm614 = vweird.f32 %v608
  %vm615 = vmor %vm613, %vm614
  %v616 = vsel %vm615, %v608, %v612
  %v617 = vand.u32 2147483647, %v359
  %vm618 = vcmp.eq.f32.partialorder %v617, 8.507059e+37
  %v619 = vand.u32 %v359, 2147483648
  %v620 = vor.u32 1.1754944e-38, %v619
  %v621 = vsel %vm618, %v620, %v616
  %v622 = vmul.f32 1.0, %v621
  %v623 = vrcp.pop %v360
  %v624 = vmul.f32 %v360, %v623
  %v625 = vsub.f32 1.0, %v624
  %v626 = vmul.f32 %v623, %v625
  %v627 = vadd.f32 %v623, %v626
  %vm628 = vweird.f32 %v360
  %vm629 = vweird.f32 %v623
  %vm630 = vmor %vm628, %vm629
  %v631 = vsel %vm630, %v623, %v627
  %v632 = vand.u32 2147483647, %v360
  %vm633 = vcmp.eq.f32.partialorder %v632, 8.507059e+37
  %v634 = vand.u32 %v360, 2147483648
  %v635 = vor.u32 1.1754944e-38, %v634
  %v636 = vsel %vm633, %v635, %v631
  %v637 = vmul.f32 1.0, %v636
  %v638 = vrcp.pop %v361
  %v639 = vmul.f32 %v361, %v638
  %v640 = vsub.f32 1.0, %v639
  %v641 = vmul.f32 %v638, %v640
  %v642 = vadd.f32 %v638, %v641
  %vm643 = vweird.f32 %v361
  %vm644 = vweird.f32 %v638
  %vm645 = vmor %vm643, %vm644
  %v646 = vsel %vm645, %v638, %v642
  %v647 = vand.u32 2147483647, %v361
  %vm648 = vcmp.eq.f32.partialorder %v647, 8.507059e+37
  %v649 = vand.u32 %v361, 2147483648
  %v650 = vor.u32 1.1754944e-38, %v649
  %v651 = vsel %vm648, %v650, %v646
  %v652 = vmul.f32 1.0, %v651
  %v653 = vrcp.pop %v362
  %v654 = vmul.f32 %v362, %v653
  %v655 = vsub.f32 1.0, %v654
  %v656 = vmul.f32 %v653, %v655
  %v657 = vadd.f32 %v653, %v656
  %vm658 = vweird.f32 %v362
  %vm659 = vweird.f32 %v653
  %vm660 = vmor %vm658, %vm659
  %v661 = vsel %vm660, %v653, %v657
  %v662 = vand.u32 2147483647, %v362
  %vm663 = vcmp.eq.f32.partialorder %v662, 8.507059e+37
  %v664 = vand.u32 %v362, 2147483648
  %v665 = vor.u32 1.1754944e-38, %v664
  %v666 = vsel %vm663, %v665, %v661
  %v667 = vmul.f32 1.0, %v666
  %v668 = vrcp.pop %v363
  %v669 = vmul.f32 %v363, %v668
  %v670 = vsub.f32 1.0, %v669
  %v671 = vmul.f32 %v668, %v670
  %v672 = vadd.f32 %v668, %v671
  %vm673 = vweird.f32 %v363
  %vm674 = vweird.f32 %v668
  %vm675 = vmor %vm673, %vm674
  %v676 = vsel %vm675, %v668, %v672
  %v677 = vand.u32 2147483647, %v363
  %vm678 = vcmp.eq.f32.partialorder %v677, 8.507059e+37
  %v679 = vand.u32 %v363, 2147483648
  %v680 = vor.u32 1.1754944e-38, %v679
  %v681 = vsel %vm678, %v680, %v676
  %v682 = vmul.f32 1.0, %v681
  %v683 = vrcp.pop %v364
  %v684 = vmul.f32 %v364, %v683
  %v685 = vsub.f32 1.0, %v684
  %v686 = vmul.f32 %v683, %v685
  %v687 = vadd.f32 %v683, %v686
  %vm688 = vweird.f32 %v364
  %vm689 = vweird.f32 %v683
  %vm690 = vmor %vm688, %vm689
  %v691 = vsel %vm690, %v683, %v687
  %v692 = vand.u32 2147483647, %v364
  %vm693 = vcmp.eq.f32.partialorder %v692, 8.507059e+37
  %v694 = vand.u32 %v364, 2147483648
  %v695 = vor.u32 1.1754944e-38, %v694
  %v696 = vsel %vm693, %v695, %v691
  %v697 = vmul.f32 1.0, %v696
  %v698 = vrcp.pop %v365
  %v699 = vmul.f32 %v365, %v698
  %v700 = vsub.f32 1.0, %v699
  %v701 = vmul.f32 %v698, %v700
  %v702 = vadd.f32 %v698, %v701
  %vm703 = vweird.f32 %v365
  %vm704 = vweird.f32 %v698
  %vm705 = vmor %vm703, %vm704
  %v706 = vsel %vm705, %v698, %v702
  %v707 = vand.u32 2147483647, %v365
  %vm708 = vcmp.eq.f32.partialorder %v707, 8.507059e+37
  %v709 = vand.u32 %v365, 2147483648
  %v710 = vor.u32 1.1754944e-38, %v709
  %v711 = vsel %vm708, %v710, %v706
  %v712 = vmul.f32 1.0, %v711
  %v713 = vrcp.pop %v366
  %v714 = vmul.f32 %v366, %v713
  %v715 = vsub.f32 1.0, %v714
  %v716 = vmul.f32 %v713, %v715
  %v717 = vadd.f32 %v713, %v716
  %vm718 = vweird.f32 %v366
  %vm719 = vweird.f32 %v713
  %vm720 = vmor %vm718, %vm719
  %v721 = vsel %vm720, %v713, %v717
  %v722 = vand.u32 2147483647, %v366
  %vm723 = vcmp.eq.f32.partialorder %v722, 8.507059e+37
  %v724 = vand.u32 %v366, 2147483648
  %v725 = vor.u32 1.1754944e-38, %v724
  %v726 = vsel %vm723, %v725, %v721
  %v727 = vmul.f32 1.0, %v726
  %v728 = vrcp.pop %v367
  %v729 = vmul.f32 %v367, %v728
  %v730 = vsub.f32 1.0, %v729
  %v731 = vmul.f32 %v728, %v730
  %v732 = vadd.f32 %v728, %v731
  %vm733 = vweird.f32 %v367
  %vm734 = vweird.f32 %v728
  %vm735 = vmor %vm733, %vm734
  %v736 = vsel %vm735, %v728, %v732
  %v737 = vand.u32 2147483647, %v367
  %vm738 = vcmp.eq.f32.partialorder %v737, 8.507059e+37
  %v739 = vand.u32 %v367, 2147483648
  %v740 = vor.u32 1.1754944e-38, %v739
  %v741 = vsel %vm738, %v740, %v736
  %v742 = vmul.f32 1.0, %v741
  %v743 = vmul.f32 %v382, 2.0
  %v744 = vmul.f32 %v397, 2.0
  %v745 = vmul.f32 %v412, 2.0
  %v746 = vmul.f32 %v427, 2.0
  %v747 = vmul.f32 %v442, 2.0
  %v748 = vmul.f32 %v457, 2.0
  %v749 = vmul.f32 %v472, 2.0
  %v750 = vmul.f32 %v487, 2.0
  %v751 = vmul.f32 %v502, 2.0
  %v752 = vmul.f32 %v517, 2.0
  %v753 = vmul.f32 %v532, 2.0
  %v754 = vmul.f32 %v547, 2.0
  %v755 = vmul.f32 %v562, 2.0
  %v756 = vmul.f32 %v577, 2.0
  %v757 = vmul.f32 %v592, 2.0
  %v758 = vmul.f32 %v607, 2.0
  %v759 = vmul.f32 %v622, 2.0
  %v760 = vmul.f32 %v637, 2.0
  %v761 = vmul.f32 %v652, 2.0
  %v762 = vmul.f32 %v667, 2.0
  %v763 = vmul.f32 %v682, 2.0
  %v764 = vmul.f32 %v697, 2.0
  %v765 = vmul.f32 %v712, 2.0
  %v766 = vmul.f32 %v727, 2.0
  %v767 = vmul.f32 %v742, 2.0
  %vm768 = vcmp.ge.f32.partialorder %v93, %v121
  %vm769 = vcmp.ge.f32.partialorder %v94, %v126
  %vm770 = vcmp.ge.f32.partialorder %v95, %v131
  %vm771 = vcmp.ge.f32.partialorder %v96, %v136
  %vm772 = vcmp.ge.f32.partialorder %v97, %v141
  %vm773 = vcmp.ge.f32.partialorder %v98, %v146
  %vm774 = vcmp.ge.f32.partialorder %v99, %v151
  %vm775 = vcmp.ge.f32.partialorder %v100, %v156
  %vm776 = vcmp.ge.f32.partialorder %v101, %v161
  %vm777 = vcmp.ge.f32.partialorder %v102, %v166
  %vm778 = vcmp.ge.f32.partialorder %v103, %v171
  %vm779 = vcmp.ge.f32.partialorder %v104, %v176
  %vm780 = vcmp.ge.f32.partialorder %v105, %v181
  %vm781 = vcmp.ge.f32.partialorder %v106, %v186
  %vm782 = vcmp.ge.f32.partialorder %v107, %v191
  %vm783 = vcmp.ge.f32.partialorder %v108, %v196
  %vm784 = vcmp.ge.f32.partialorder %v109, %v201
  %vm785 = vcmp.ge.f32.partialorder %v110, %v206
  %vm786 = vcmp.ge.f32.partialorder %v111, %v211
  %vm787 = vcmp.ge.f32.partialorder %v112, %v216
  %vm788 = vcmp.ge.f32.partialorder %v113, %v221
  %vm789 = vcmp.ge.f32.partialorder %v114, %v226
  %vm790 = vcmp.ge.f32.partialorder %v115, %v231
  %vm791 = vcmp.ge.f32.partialorder %v116, %v236
  %vm792 = vcmp.ge.f32.partialorder %v117, %v241
  %v793 = vsel %vm768, %v743, 0.1
  %v794 = vsel %vm769, %v744, 0.1
  %v795 = vsel %vm770, %v745, 0.1
  %v796 = vsel %vm771, %v746, 0.1
  %v797 = vsel %vm772, %v747, 0.1
  %v798 = vsel %vm773, %v748, 0.1
  %v799 = vsel %vm774, %v749, 0.1
  %v800 = vsel %vm775, %v750, 0.1
  %v801 = vsel %vm776, %v751, 0.1
  %v802 = vsel %vm777, %v752, 0.1
  %v803 = vsel %vm778, %v753, 0.1
  %v804 = vsel %vm779, %v754, 0.1
  %v805 = vsel %vm780, %v755, 0.1
  %v806 = vsel %vm781, %v756, 0.1
  %v807 = vsel %vm782, %v757, 0.1
  %v808 = vsel %vm783, %v758, 0.1
  %v809 = vsel %vm784, %v759, 0.1
  %v810 = vsel %vm785, %v760, 0.1
  %v811 = vsel %vm786, %v761, 0.1
  %v812 = vsel %vm787, %v762, 0.1
  %v813 = vsel %vm788, %v763, 0.1
  %v814 = vsel %vm789, %v764, 0.1
  %v815 = vsel %vm790, %v765, 0.1
  %v816 = vsel %vm791, %v766, 0.1
  %v817 = vsel %vm792, %v767, 0.1
  %v818 = vmul.f32 %v14, %v793
  %v819 = vmul.f32 %v15, %v794
  %v820 = vmul.f32 %v16, %v795
  %v821 = vmul.f32 %v17, %v796
  %v822 = vmul.f32 %v18, %v797
  %v823 = vmul.f32 %v19, %v798
  %v824 = vmul.f32 %v20, %v799
  %v825 = vmul.f32 %v21, %v800
  %v826 = vmul.f32 %v22, %v801
  %v827 = vmul.f32 %v23, %v802
  %v828 = vmul.f32 %v24, %v803
  %v829 = vmul.f32 %v25, %v804
  %v830 = vmul.f32 %v26, %v805
  %v831 = vmul.f32 %v27, %v806
  %v832 = vmul.f32 %v28, %v807
  %v833 = vmul.f32 %v29, %v808
  %v834 = vmul.f32 %v30, %v809
  %v835 = vmul.f32 %v31, %v810
  %v836 = vmul.f32 %v32, %v811
  %v837 = vmul.f32 %v33, %v812
  %v838 = vmul.f32 %v34, %v813
  %v839 = vmul.f32 %v35, %v814
  %v840 = vmul.f32 %v36, %v815
  %v841 = vmul.f32 %v37, %v816
  %v842 = vmul.f32 %v38, %v817
  %vm843 = vcmask 326656
  %844 = vst.msk [vmem:[%s3] sm:$0xff] %vm843, %v818
  %845 = vst.msk [vmem:[%s3 + $0x8] sm:$0xff] %vm843, %v819
  %846 = vst.msk [vmem:[%s3 + $0x10] sm:$0xff] %vm843, %v820
  %847 = vst.msk [vmem:[%s3 + $0x18] sm:$0xff] %vm843, %v821
  %848 = vst.msk [vmem:[%s3 + $0x20] sm:$0xff] %vm843, %v822
  %849 = vst.msk [vmem:[%s3 + $0x28] sm:$0xff] %vm843, %v823
  %850 = vst.msk [vmem:[%s3 + $0x30] sm:$0xff] %vm843, %v824
  %851 = vst.msk [vmem:[%s3 + $0x38] sm:$0xff] %vm843, %v825
  %852 = vst.msk [vmem:[%s3 + $0x40] sm:$0xff] %vm843, %v826
  %853 = vst.msk [vmem:[%s3 + $0x48] sm:$0xff] %vm843, %v827
  %854 = vst.msk [vmem:[%s3 + $0x50] sm:$0xff] %vm843, %v828
  %855 = vst.msk [vmem:[%s3 + $0x58] sm:$0xff] %vm843, %v829
  %856 = vst.msk [vmem:[%s3 + $0x60] sm:$0xff] %vm843, %v830
  %857 = vst.msk [vmem:[%s3 + $0x68] sm:$0xff] %vm843, %v831
  %858 = vst.msk [vmem:[%s3 + $0x70] sm:$0xff] %vm843, %v832
  %859 = vst.msk [vmem:[%s3 + $0x78] sm:$0xff] %vm843, %v833
  %860 = vst.msk [vmem:[%s3 + $0x80] sm:$0xff] %vm843, %v834
  %861 = vst.msk [vmem:[%s3 + $0x88] sm:$0xff] %vm843, %v835
  %862 = vst.msk [vmem:[%s3 + $0x90] sm:$0xff] %vm843, %v836
  %863 = vst.msk [vmem:[%s3 + $0x98] sm:$0xff] %vm843, %v837
  %864 = vst.msk [vmem:[%s3 + $0xa0] sm:$0xff] %vm843, %v838
  %865 = vst.msk [vmem:[%s3 + $0xa8] sm:$0xff] %vm843, %v839
  %866 = vst.msk [vmem:[%s3 + $0xb0] sm:$0xff] %vm843, %v840
  %867 = vst.msk [vmem:[%s3 + $0xb8] sm:$0xff] %vm843, %v841
  %868 = vst.msk [vmem:[%s3 + $0xc0] sm:$0xff] %vm843, %v842
  // Predicated region
  $region14: #{_anchor_ungsl_pallas.1} parent=0 // pred_check
    _
  $region15: #{_anchor_ungsl_pallas.1} parent=0 // pred_check_branch
    %870 = sbr.rel (0) target = $region17
  $region16: #{_anchor_ungsl_pallas.1} parent=0 // pred_region
    _
  $region17: #{_anchor_ungsl_pallas.1} parent=0 // pred_fallthru
    _
  // Predicated region
  $region18: #{_anchor_ungsl_pallas.1} parent=0 // pred_check
    _
  $region19: #{_anchor_ungsl_pallas.1} parent=0 // pred_check_branch
    %872 = sbr.rel (0) target = $region21
  $region20: #{_anchor_ungsl_pallas.1} parent=0 // pred_region
    _
  $region21: #{_anchor_ungsl_pallas.1} parent=0 // pred_fallthru
    _

</llo_original>
